<compile_context>
chip_gen: v7x
topology: tpu7x:2x2x1
jax: 0.10.0
libtpu: 0.0.40
codegen_flags: <defaults>
</compile_context>

<pallas_src>
import functools

import numpy as np
import jax
import jax.numpy as jnp
from jax.experimental import pallas as pl
from jax.experimental.pallas import tpu as pltpu


# ----------------------------------------------------------------------------
# Pallas kernel: one [TILE_N, TILE_T] tile of the matching cost matrix.
# ----------------------------------------------------------------------------
def _cost_kernel(logits_ref, onehot_ref, obox_ref, tboxT_ref, out_ref, *,
                 w_class, w_bbox, w_giou):
    alpha = 0.25
    # gamma = 2.0 in the reference; p ** 2.0 == square(p)
    eps = 1e-8

    # ---- focal classification cost on the small [TILE_N, C_pad] domain -----
    # w_class folded in here: TILE_N*C_pad multiplies instead of TILE_N*TILE_T.
    x = logits_ref[...]                              # [TILE_N, C_pad] f32
    p = jax.nn.sigmoid(x)
    log_p = jnp.log(p + eps)
    log_1mp = log_p - x                              # log(1-p) == log(p) - x
    neg_cost = ((1.0 - alpha) * w_class) * jnp.square(p) * (-log_1mp)
    pos_cost = (alpha * w_class) * jnp.square(1.0 - p) * (-log_p)
    # bf16 cast -> single MXU pass; 0/1 one-hot is exact in bf16 and the
    # accumulation stays f32 via preferred_element_type.
    cc = (pos_cost - neg_cost).astype(jnp.bfloat16)  # [TILE_N, C_pad]

    # gather columns tgt_ids -> [TILE_N, TILE_T] via exact one-hot matmul (MXU)
    cost_class = jnp.dot(cc, onehot_ref[...],
                         preferred_element_type=jnp.float32)

    # ---- box costs on the [TILE_N, TILE_T] domain ---------------------------
    ob = obox_ref[...]                               # [TILE_N, 4]  cxcywh
    tb = tboxT_ref[...]                              # [4, TILE_T]  cxcywh (T)

    ocx, ocy, ow, oh = ob[:, 0:1], ob[:, 1:2], ob[:, 2:3], ob[:, 3:4]  # [TILE_N,1]
    tcx, tcy, tw, th = tb[0:1, :], tb[1:2, :], tb[2:3, :], tb[3:4, :]  # [1,TILE_T]

    # L1 cdist on cxcywh coordinates
    cost_l1 = (jnp.abs(ocx - tcx) + jnp.abs(ocy - tcy)
               + jnp.abs(ow - tw) + jnp.abs(oh - th))

    # cxcywh -> xyxy
    ox1 = ocx - 0.5 * ow; oy1 = ocy - 0.5 * oh
    ox2 = ocx + 0.5 * ow; oy2 = ocy + 0.5 * oh
    tx1 = tcx - 0.5 * tw; ty1 = tcy - 0.5 * th
    tx2 = tcx + 0.5 * tw; ty2 = tcy + 0.5 * th

    area_o = ow * oh                                 # [TILE_N, 1]
    area_t = tw * th                                 # [1, TILE_T]

    inter = (jnp.maximum(jnp.minimum(ox2, tx2) - jnp.maximum(ox1, tx1), 0.0) *
             jnp.maximum(jnp.minimum(oy2, ty2) - jnp.maximum(oy1, ty1), 0.0))
    union = area_o + area_t - inter
    area_e = (jnp.maximum(jnp.maximum(ox2, tx2) - jnp.minimum(ox1, tx1), 0.0) *
              jnp.maximum(jnp.maximum(oy2, ty2) - jnp.minimum(oy1, ty1), 0.0))

    # giou = iou - 1 + union/area_e ; cost_giou = -giou.
    # Exact reciprocals (still EUP, off the VALU path) so near-tie costs do
    # not flip assignments vs. the reference.
    iou = inter * pl.reciprocal(union)
    cost_giou = 1.0 - iou - union * pl.reciprocal(area_e)

    # single fused store (no read-modify-write of the output tile)
    out_ref[...] = cost_class + w_bbox * cost_l1 + w_giou * cost_giou


# ----------------------------------------------------------------------------
# Tiling / VMEM budgeting and the jitted wrapper around pallas_call.
# ----------------------------------------------------------------------------
def _round_up(x, m):
    return ((x + m - 1) // m) * m


def _ceil_div(a, b):
    return -(-a // b)


def _vmem_capacity_bytes():
    """Physical VMEM per TensorCore; conservative 64 MiB (v7x) fallback."""
    try:
        info = pltpu.get_tpu_info()
        for name in ("vmem_capacity_bytes", "vmem_size_bytes", "vmem_bytes"):
            val = getattr(info, name, None)
            if val:
                return int(val)
    except Exception:
        pass
    return 64 * 1024 * 1024


def _choose_tiling(n, t, c_pad):
    """Pick (tile_n, n_pad, tile_t, t_pad, vmem_limit) against the VMEM budget."""
    vmem_cap = _vmem_capacity_bytes()
    # Leave ~3/8 headroom for compiler-internal scratch; cap at 80 MiB.
    budget = min((vmem_cap * 5) // 8, 80 * 1024 * 1024)
    # Larger row tiles on v5e/v6e (128 MiB VMEM), 512 on v7x (64 MiB).
    max_tile_n = 1024 if vmem_cap >= 96 * 1024 * 1024 else 512
    max_tile_t = 1024

    def vmem_bytes(tn, tt):
        return (2 * tn * c_pad * 4      # logits tile, f32, double-buffered
                + 2 * c_pad * tt * 2    # one-hot, bf16, double-buffered
                + 2 * tn * 4 * 4        # pred boxes tile
                + 2 * 4 * tt * 4        # target boxes (transposed) tile
                + 2 * tn * tt * 4)      # output tile

    # ---- target (lane) axis -------------------------------------------------
    t_pad0 = max(_round_up(max(t, 1), 128), 128)
    grid_t = max(1, _ceil_div(t_pad0, max_tile_t))
    tile_t = _round_up(_ceil_div(t_pad0, grid_t), 128)
    while tile_t > 128 and vmem_bytes(8, tile_t) > budget:
        grid_t *= 2
        tile_t = _round_up(_ceil_div(t_pad0, grid_t), 128)
    t_pad = tile_t * grid_t

    # ---- query (sublane) axis ----------------------------------------------
    n8 = _round_up(max(n, 1), 8)
    grid_n = max(1, _ceil_div(n8, max_tile_n))
    if grid_n == 1 and n8 > 8:
        grid_n = 2                      # keep both v7x TensorCores busy
    tile_n = _round_up(_ceil_div(n8, grid_n), 8)
    while tile_n > 8 and vmem_bytes(tile_n, tile_t) > budget:
        grid_n *= 2
        tile_n = _round_up(_ceil_div(n8, grid_n), 8)
    n_pad = tile_n * grid_n

    return tile_n, n_pad, tile_t, t_pad, int(budget)


@functools.partial(jax.jit, static_argnames=(
    "c_pad", "tile_n", "n_pad", "tile_t", "t_pad", "vmem_limit_bytes",
    "w_class", "w_bbox", "w_giou"))
def _cost_matrix(pred_logits, pred_boxes, tgt_ids, tgt_boxes, *, c_pad, tile_n,
                 n_pad, tile_t, t_pad, vmem_limit_bytes, w_class, w_bbox,
                 w_giou):
    bs, nq, num_classes = pred_logits.shape
    n = bs * nq
    t = tgt_ids.shape[0]

    logits = pred_logits.reshape(n, num_classes).astype(jnp.float32)
    obox = pred_boxes.reshape(n, 4).astype(jnp.float32)
    tbox = tgt_boxes.astype(jnp.float32)                 # [T, 4]

    # Padded inputs. Dummy boxes keep all divisions finite in padded slots.
    logits_p = jnp.zeros((n_pad, c_pad), jnp.float32).at[:n, :num_classes].set(logits)
    onehot = jnp.zeros((c_pad, t_pad), jnp.bfloat16)
    if t > 0:
        onehot = onehot.at[tgt_ids, jnp.arange(t)].set(1.0)
    dummy = jnp.array([0.5, 0.5, 0.25, 0.25], jnp.float32)
    obox_p = jnp.tile(dummy[None, :], (n_pad, 1)).at[:n, :].set(obox)
    tboxT_p = jnp.tile(dummy[:, None], (1, t_pad)).at[:, :t].set(tbox.T)

    kernel = functools.partial(_cost_kernel, w_class=w_class, w_bbox=w_bbox,
                               w_giou=w_giou)

    c_full = pl.pallas_call(
        kernel,
        out_shape=jax.ShapeDtypeStruct((n_pad, t_pad), jnp.float32),
        grid=(n_pad // tile_n, t_pad // tile_t),
        in_specs=[
            pl.BlockSpec((tile_n, c_pad), lambda i, j: (i, 0)),
            pl.BlockSpec((c_pad, tile_t), lambda i, j: (0, j)),
            pl.BlockSpec((tile_n, 4), lambda i, j: (i, 0)),
            pl.BlockSpec((4, tile_t), lambda i, j: (0, j)),
        ],
        out_specs=pl.BlockSpec((tile_n, tile_t), lambda i, j: (i, j)),
        compiler_params=pltpu.CompilerParams(
            dimension_semantics=("parallel", "parallel"),
            vmem_limit_bytes=vmem_limit_bytes),
    )(logits_p, onehot, obox_p, tboxT_p)

    return c_full[:n, :t].reshape(bs, nq, t)


def compute_cost_matrix(pred_logits, pred_boxes, tgt_ids, tgt_boxes,
                        cost_class=1.0, cost_bbox=1.0, cost_giou=1.0):
    """Returns C of shape [bs, num_queries, total_targets] (float32)."""
    bs, nq, num_classes = pred_logits.shape
    n = bs * nq
    t = int(tgt_ids.shape[0])
    c_pad = max(_round_up(num_classes, 128), 128)
    tile_n, n_pad, tile_t, t_pad, vmem_limit = _choose_tiling(n, t, c_pad)
    return _cost_matrix(pred_logits, pred_boxes, tgt_ids, tgt_boxes,
                        c_pad=c_pad, tile_n=tile_n, n_pad=n_pad,
                        tile_t=tile_t, t_pad=t_pad,
                        vmem_limit_bytes=vmem_limit,
                        w_class=float(cost_class), w_bbox=float(cost_bbox),
                        w_giou=float(cost_giou))


# ----------------------------------------------------------------------------
# Host-side assignment (no Pallas equivalent): Jonker–Volgenant / shortest
# augmenting path, O(n^3), matches scipy.optimize.linear_sum_assignment.
# ----------------------------------------------------------------------------
def _linear_sum_assignment(cost):
    cost = np.asarray(cost, dtype=np.float64)
    nr, nc = cost.shape
    if nr == 0 or nc == 0:
        return np.zeros((0,), np.int64), np.zeros((0,), np.int64)
    transposed = nr > nc
    if transposed:
        cost = cost.T
        nr, nc = cost.shape

    u = np.zeros(nr)
    v = np.zeros(nc)
    row4col = np.full(nc, -1, dtype=np.int64)
    col4row = np.full(nr, -1, dtype=np.int64)

    for cur_row in range(nr):
        shortest = np.full(nc, np.inf)
        path = np.full(nc, -1, dtype=np.int64)
        SR = np.zeros(nr, dtype=bool)
        SC = np.zeros(nc, dtype=bool)
        min_val = 0.0
        i = cur_row
        sink = -1
        while sink == -1:
            SR[i] = True
            cols = np.nonzero(~SC)[0]
            r = min_val + cost[i, cols] - u[i] - v[cols]
            better = r < shortest[cols]
            bcols = cols[better]
            shortest[bcols] = r[better]
            path[bcols] = i
            j = cols[np.argmin(shortest[cols])]
            min_val = shortest[j]
            if row4col[j] == -1:
                sink = j
            else:
                SC[j] = True
                i = row4col[j]
        # dual update
        u[cur_row] += min_val
        other = SR.copy()
        other[cur_row] = False
        rows_in = np.nonzero(other)[0]
        if rows_in.size:
            u[rows_in] += min_val - shortest[col4row[rows_in]]
        v[SC] -= min_val - shortest[SC]
        # augment
        j = sink
        while True:
            i = path[j]
            row4col[j] = i
            col4row[i], j = j, col4row[i]
            if i == cur_row:
                break

    rows = np.arange(nr, dtype=np.int64)
    cols = col4row.astype(np.int64)
    if transposed:
        order = np.argsort(cols, kind="stable")
        return cols[order], rows[order]
    return rows, cols


def _split_true_pseudo(indices, targets):
    true_indices, pseudo_indices, pseudo_weight = [], [], []
    for i, (src_i, tgt_i) in enumerate(indices):
        pseudo_idx = np.nonzero(np.asarray(targets[i]["pseudo_mask"], bool))[0]
        weight_i = np.asarray(targets[i]["weight"])
        p_mask = np.isin(tgt_i, pseudo_idx)
        pseudo_weight.append(weight_i[tgt_i[p_mask]])
        true_indices.append((src_i[~p_mask], tgt_i[~p_mask]))
        pseudo_indices.append((src_i[p_mask], tgt_i[p_mask]))
    pseudo_weight = (np.concatenate(pseudo_weight) if pseudo_weight
                     else np.zeros((0,), np.float32))
    return true_indices, pseudo_indices, pseudo_weight


def hungarian_matcher_forward(outputs, targets,
                              cost_class=1.0, cost_bbox=1.0, cost_giou=1.0):
    assert cost_class != 0 or cost_bbox != 0 or cost_giou != 0
    pred_logits = outputs["pred_logits"]
    pred_boxes = outputs["pred_boxes"]
    bs = pred_logits.shape[0]

    tgt_ids = jnp.concatenate([v["labels"] for v in targets])
    tgt_bbox = jnp.concatenate([v["boxes"] for v in targets])

    C = compute_cost_matrix(pred_logits, pred_boxes, tgt_ids, tgt_bbox,
                            cost_class, cost_bbox, cost_giou)
    C.block_until_ready()
    C_np = np.asarray(C)

    sizes = [int(v["boxes"].shape[0]) for v in targets]
    splits = np.cumsum(sizes)[:-1]
    chunks = np.split(C_np, splits, axis=-1)
    # TODO(synk): the combinatorial linear_sum_assignment has no Pallas
    # equivalent; a host-side O(n^3) Jonker-Volgenant implementation is used.
    indices = [_linear_sum_assignment(chunks[i][i]) for i in range(bs)]

    if "pseudo_mask" in targets[0]:
        true_indices, pseudo_indices, pseudo_weight = _split_true_pseudo(
            indices, targets)
        return true_indices, pseudo_indices, pseudo_weight, C
    outputs["ignore"] = []
    return [(i.astype(np.int64), j.astype(np.int64)) for i, j in indices], C


if __name__ == "__main__":
    key = jax.random.PRNGKey(0)
    bs, num_queries, num_classes = 2, 8, 32
    sizes = [3, 2]

    k1, k2, k3, k4, _ = jax.random.split(key, 5)
    pred_logits = jax.random.normal(k1, (bs, num_queries, num_classes),
                                    jnp.float32)
    cxcy = jax.random.uniform(k2, (bs, num_queries, 2), minval=0.2, maxval=0.8)
    wh = jax.random.uniform(k3, (bs, num_queries, 2), minval=0.05, maxval=0.3)
    pred_boxes = jnp.concatenate([cxcy, wh], axis=-1)

    targets = []
    for b, nt in enumerate(sizes):
        kk = jax.random.fold_in(k4, b)
        ka, kb, kc = jax.random.split(kk, 3)
        labels = jax.random.randint(ka, (nt,), 0, num_classes)
        t_cxcy = jax.random.uniform(kb, (nt, 2), minval=0.2, maxval=0.8)
        t_wh = jax.random.uniform(kc, (nt, 2), minval=0.05, maxval=0.3)
        boxes = jnp.concatenate([t_cxcy, t_wh], axis=-1)
        targets.append({"labels": labels, "boxes": boxes})

    outputs = {"pred_logits": pred_logits, "pred_boxes": pred_boxes}
    indices, C = hungarian_matcher_forward(outputs, targets,
                                           cost_class=1.0, cost_bbox=1.0,
                                           cost_giou=1.0)
    jax.block_until_ready(C)

    C_np = np.asarray(C)
    assert C_np.shape == (bs, num_queries, sum(sizes))
    assert np.isfinite(C_np).all()
    assert len(indices) == bs
    for (src_i, tgt_i), nt in zip(indices, sizes):
        assert len(src_i) == len(tgt_i) == min(num_queries, nt)
    print("KERNEL_OK")
</pallas_src>

<mosaic_0001>
module attributes {stable_mosaic.version = 11 : i64} {
  func.func @_cost_kernel(%arg0: i32, %arg1: i32, %arg2: memref<8x128xf32, #tpu.memory_space<vmem>>, %arg3: memref<128x128xbf16, #tpu.memory_space<vmem>>, %arg4: memref<8x4xf32, #tpu.memory_space<vmem>>, %arg5: memref<4x128xf32, #tpu.memory_space<vmem>>, %arg6: memref<8x128xf32, #tpu.memory_space<vmem>>) attributes {dimension_semantics = [#tpu.dimension_semantics<parallel>, #tpu.dimension_semantics<parallel>], iteration_bounds = array<i64: 2, 1>, scalar_prefetch = 0 : i64, scratch_operands = 0 : i64, tpu.core_type = #tpu.core_type<tc>, window_params = [{transform_indices = @transform_0, window_bounds = array<i64: 8, 128>}, {transform_indices = @transform_1, window_bounds = array<i64: 128, 128>}, {transform_indices = @transform_2, window_bounds = array<i64: 8, 4>}, {transform_indices = @transform_3, window_bounds = array<i64: 4, 128>}, {transform_indices = @transform_4, window_bounds = array<i64: 8, 128>}]} {
    %c0 = arith.constant 0 : index
    %c0_0 = arith.constant 0 : index
    %0 = vector.load %arg2[%c0, %c0_0] : memref<8x128xf32, #tpu.memory_space<vmem>>, vector<8x128xf32>
    %1 = arith.negf %0 : vector<8x128xf32>
    %2 = math.exp %1 : vector<8x128xf32>
    %cst = arith.constant 1.000000e+00 : f32
    %3 = vector.broadcast %cst : f32 to vector<8x128xf32>
    %4 = arith.addf %3, %2 : vector<8x128xf32>
    %5 = arith.divf %3, %4 : vector<8x128xf32>
    %cst_1 = arith.constant 9.99999993E-9 : f32
    %6 = vector.broadcast %cst_1 : f32 to vector<8x128xf32>
    %7 = arith.addf %5, %6 : vector<8x128xf32>
    %8 = math.log %7 : vector<8x128xf32>
    %9 = arith.subf %8, %0 : vector<8x128xf32>
    %10 = arith.mulf %5, %5 : vector<8x128xf32>
    %cst_2 = arith.constant 7.500000e-01 : f32
    %11 = vector.broadcast %cst_2 : f32 to vector<8x128xf32>
    %12 = arith.mulf %11, %10 : vector<8x128xf32>
    %cst_3 = arith.constant 0.000000e+00 : f32
    %13 = vector.broadcast %cst_3 : f32 to vector<8x128xf32>
    %14 = arith.subf %13, %9 : vector<8x128xf32>
    %15 = arith.mulf %12, %14 : vector<8x128xf32>
    %cst_4 = arith.constant 1.000000e+00 : f32
    %16 = vector.broadcast %cst_4 : f32 to vector<8x128xf32>
    %17 = arith.subf %16, %5 : vector<8x128xf32>
    %18 = arith.mulf %17, %17 : vector<8x128xf32>
    %cst_5 = arith.constant 2.500000e-01 : f32
    %19 = vector.broadcast %cst_5 : f32 to vector<8x128xf32>
    %20 = arith.mulf %19, %18 : vector<8x128xf32>
    %cst_6 = arith.constant 0.000000e+00 : f32
    %21 = vector.broadcast %cst_6 : f32 to vector<8x128xf32>
    %22 = arith.subf %21, %8 : vector<8x128xf32>
    %23 = arith.mulf %20, %22 : vector<8x128xf32>
    %24 = arith.subf %23, %15 : vector<8x128xf32>
    %25 = arith.truncf %24 : vector<8x128xf32> to vector<8x128xbf16>
    %c0_7 = arith.constant 0 : index
    %c0_8 = arith.constant 0 : index
    %26 = vector.load %arg3[%c0_7, %c0_8] : memref<128x128xbf16, #tpu.memory_space<vmem>>, vector<128x128xbf16>
    %cst_9 = arith.constant dense<0.000000e+00> : vector<8x128xf32>
    %27 = tpu.matmul %25, %26, %cst_9 {dimension_numbers = #tpu.dot_dimension_numbers<[1], [0], [0], [1], [0, 0, 1, 1], [], []>} : vector<8x128xbf16>, vector<128x128xbf16>, vector<8x128xf32> -> vector<8x128xf32>
    %c0_10 = arith.constant 0 : index
    %c0_11 = arith.constant 0 : index
    %28 = vector.load %arg4[%c0_10, %c0_11] : memref<8x4xf32, #tpu.memory_space<vmem>>, vector<8x4xf32>
    %c0_12 = arith.constant 0 : index
    %c0_13 = arith.constant 0 : index
    %29 = vector.load %arg5[%c0_12, %c0_13] : memref<4x128xf32, #tpu.memory_space<vmem>>, vector<4x128xf32>
    %30 = vector.extract_strided_slice %28 {offsets = [0, 0], sizes = [8, 1], strides = [1, 1]} : vector<8x4xf32> to vector<8x1xf32>
    %31 = vector.extract_strided_slice %28 {offsets = [0, 1], sizes = [8, 1], strides = [1, 1]} : vector<8x4xf32> to vector<8x1xf32>
    %32 = vector.extract_strided_slice %28 {offsets = [0, 2], sizes = [8, 1], strides = [1, 1]} : vector<8x4xf32> to vector<8x1xf32>
    %33 = vector.extract_strided_slice %28 {offsets = [0, 3], sizes = [8, 1], strides = [1, 1]} : vector<8x4xf32> to vector<8x1xf32>
    %34 = vector.extract_strided_slice %29 {offsets = [0, 0], sizes = [1, 128], strides = [1, 1]} : vector<4x128xf32> to vector<1x128xf32>
    %35 = vector.extract_strided_slice %29 {offsets = [1, 0], sizes = [1, 128], strides = [1, 1]} : vector<4x128xf32> to vector<1x128xf32>
    %36 = vector.extract_strided_slice %29 {offsets = [2, 0], sizes = [1, 128], strides = [1, 1]} : vector<4x128xf32> to vector<1x128xf32>
    %37 = vector.extract_strided_slice %29 {offsets = [3, 0], sizes = [1, 128], strides = [1, 1]} : vector<4x128xf32> to vector<1x128xf32>
    %38 = vector.broadcast %30 : vector<8x1xf32> to vector<8x128xf32>
    %39 = vector.broadcast %34 : vector<1x128xf32> to vector<8x128xf32>
    %40 = arith.subf %38, %39 : vector<8x128xf32>
    %41 = math.absf %40 : vector<8x128xf32>
    %42 = vector.broadcast %31 : vector<8x1xf32> to vector<8x128xf32>
    %43 = vector.broadcast %35 : vector<1x128xf32> to vector<8x128xf32>
    %44 = arith.subf %42, %43 : vector<8x128xf32>
    %45 = math.absf %44 : vector<8x128xf32>
    %46 = arith.addf %41, %45 : vector<8x128xf32>
    %47 = vector.broadcast %32 : vector<8x1xf32> to vector<8x128xf32>
    %48 = vector.broadcast %36 : vector<1x128xf32> to vector<8x128xf32>
    %49 = arith.subf %47, %48 : vector<8x128xf32>
    %50 = math.absf %49 : vector<8x128xf32>
    %51 = arith.addf %46, %50 : vector<8x128xf32>
    %52 = vector.broadcast %33 : vector<8x1xf32> to vector<8x128xf32>
    %53 = vector.broadcast %37 : vector<1x128xf32> to vector<8x128xf32>
    %54 = arith.subf %52, %53 : vector<8x128xf32>
    %55 = math.absf %54 : vector<8x128xf32>
    %56 = arith.addf %51, %55 : vector<8x128xf32>
    %cst_14 = arith.constant 5.000000e-01 : f32
    %57 = vector.broadcast %cst_14 : f32 to vector<8x1xf32>
    %58 = arith.mulf %57, %32 : vector<8x1xf32>
    %59 = arith.subf %30, %58 : vector<8x1xf32>
    %cst_15 = arith.constant 5.000000e-01 : f32
    %60 = vector.broadcast %cst_15 : f32 to vector<8x1xf32>
    %61 = arith.mulf %60, %33 : vector<8x1xf32>
    %62 = arith.subf %31, %61 : vector<8x1xf32>
    %cst_16 = arith.constant 5.000000e-01 : f32
    %63 = vector.broadcast %cst_16 : f32 to vector<8x1xf32>
    %64 = arith.mulf %63, %32 : vector<8x1xf32>
    %65 = arith.addf %30, %64 : vector<8x1xf32>
    %cst_17 = arith.constant 5.000000e-01 : f32
    %66 = vector.broadcast %cst_17 : f32 to vector<8x1xf32>
    %67 = arith.mulf %66, %33 : vector<8x1xf32>
    %68 = arith.addf %31, %67 : vector<8x1xf32>
    %cst_18 = arith.constant 5.000000e-01 : f32
    %69 = vector.broadcast %cst_18 : f32 to vector<1x128xf32>
    %70 = arith.mulf %69, %36 : vector<1x128xf32>
    %71 = arith.subf %34, %70 : vector<1x128xf32>
    %cst_19 = arith.constant 5.000000e-01 : f32
    %72 = vector.broadcast %cst_19 : f32 to vector<1x128xf32>
    %73 = arith.mulf %72, %37 : vector<1x128xf32>
    %74 = arith.subf %35, %73 : vector<1x128xf32>
    %cst_20 = arith.constant 5.000000e-01 : f32
    %75 = vector.broadcast %cst_20 : f32 to vector<1x128xf32>
    %76 = arith.mulf %75, %36 : vector<1x128xf32>
    %77 = arith.addf %34, %76 : vector<1x128xf32>
    %cst_21 = arith.constant 5.000000e-01 : f32
    %78 = vector.broadcast %cst_21 : f32 to vector<1x128xf32>
    %79 = arith.mulf %78, %37 : vector<1x128xf32>
    %80 = arith.addf %35, %79 : vector<1x128xf32>
    %81 = arith.mulf %32, %33 : vector<8x1xf32>
    %82 = arith.mulf %36, %37 : vector<1x128xf32>
    %83 = vector.broadcast %65 : vector<8x1xf32> to vector<8x128xf32>
    %84 = vector.broadcast %77 : vector<1x128xf32> to vector<8x128xf32>
    %85 = arith.minimumf %83, %84 : vector<8x128xf32>
    %86 = vector.broadcast %59 : vector<8x1xf32> to vector<8x128xf32>
    %87 = vector.broadcast %71 : vector<1x128xf32> to vector<8x128xf32>
    %88 = arith.maximumf %86, %87 : vector<8x128xf32>
    %89 = arith.subf %85, %88 : vector<8x128xf32>
    %cst_22 = arith.constant 0.000000e+00 : f32
    %90 = vector.broadcast %cst_22 : f32 to vector<8x128xf32>
    %91 = arith.maximumf %89, %90 : vector<8x128xf32>
    %92 = vector.broadcast %68 : vector<8x1xf32> to vector<8x128xf32>
    %93 = vector.broadcast %80 : vector<1x128xf32> to vector<8x128xf32>
    %94 = arith.minimumf %92, %93 : vector<8x128xf32>
    %95 = vector.broadcast %62 : vector<8x1xf32> to vector<8x128xf32>
    %96 = vector.broadcast %74 : vector<1x128xf32> to vector<8x128xf32>
    %97 = arith.maximumf %95, %96 : vector<8x128xf32>
    %98 = arith.subf %94, %97 : vector<8x128xf32>
    %cst_23 = arith.constant 0.000000e+00 : f32
    %99 = vector.broadcast %cst_23 : f32 to vector<8x128xf32>
    %100 = arith.maximumf %98, %99 : vector<8x128xf32>
    %101 = arith.mulf %91, %100 : vector<8x128xf32>
    %102 = vector.broadcast %81 : vector<8x1xf32> to vector<8x128xf32>
    %103 = vector.broadcast %82 : vector<1x128xf32> to vector<8x128xf32>
    %104 = arith.addf %102, %103 : vector<8x128xf32>
    %105 = arith.subf %104, %101 : vector<8x128xf32>
    %106 = vector.broadcast %65 : vector<8x1xf32> to vector<8x128xf32>
    %107 = vector.broadcast %77 : vector<1x128xf32> to vector<8x128xf32>
    %108 = arith.maximumf %106, %107 : vector<8x128xf32>
    %109 = vector.broadcast %59 : vector<8x1xf32> to vector<8x128xf32>
    %110 = vector.broadcast %71 : vector<1x128xf32> to vector<8x128xf32>
    %111 = arith.minimumf %109, %110 : vector<8x128xf32>
    %112 = arith.subf %108, %111 : vector<8x128xf32>
    %cst_24 = arith.constant 0.000000e+00 : f32
    %113 = vector.broadcast %cst_24 : f32 to vector<8x128xf32>
    %114 = arith.maximumf %112, %113 : vector<8x128xf32>
    %115 = vector.broadcast %68 : vector<8x1xf32> to vector<8x128xf32>
    %116 = vector.broadcast %80 : vector<1x128xf32> to vector<8x128xf32>
    %117 = arith.maximumf %115, %116 : vector<8x128xf32>
    %118 = vector.broadcast %62 : vector<8x1xf32> to vector<8x128xf32>
    %119 = vector.broadcast %74 : vector<1x128xf32> to vector<8x128xf32>
    %120 = arith.minimumf %118, %119 : vector<8x128xf32>
    %121 = arith.subf %117, %120 : vector<8x128xf32>
    %cst_25 = arith.constant 0.000000e+00 : f32
    %122 = vector.broadcast %cst_25 : f32 to vector<8x128xf32>
    %123 = arith.maximumf %121, %122 : vector<8x128xf32>
    %124 = arith.mulf %114, %123 : vector<8x128xf32>
    %125 = tpu.reciprocal %105 : vector<8x128xf32> -> vector<8x128xf32>
    %126 = arith.mulf %101, %125 : vector<8x128xf32>
    %cst_26 = arith.constant 1.000000e+00 : f32
    %127 = vector.broadcast %cst_26 : f32 to vector<8x128xf32>
    %128 = arith.subf %127, %126 : vector<8x128xf32>
    %129 = tpu.reciprocal %124 : vector<8x128xf32> -> vector<8x128xf32>
    %130 = arith.mulf %105, %129 : vector<8x128xf32>
    %131 = arith.subf %128, %130 : vector<8x128xf32>
    %cst_27 = arith.constant 1.000000e+00 : f32
    %132 = vector.broadcast %cst_27 : f32 to vector<8x128xf32>
    %133 = arith.mulf %132, %56 : vector<8x128xf32>
    %134 = arith.addf %27, %133 : vector<8x128xf32>
    %cst_28 = arith.constant 1.000000e+00 : f32
    %135 = vector.broadcast %cst_28 : f32 to vector<8x128xf32>
    %136 = arith.mulf %135, %131 : vector<8x128xf32>
    %137 = arith.addf %134, %136 : vector<8x128xf32>
    %c0_29 = arith.constant 0 : index
    %c0_30 = arith.constant 0 : index
    %138 = vector.load %arg6[%c0_29, %c0_30] : memref<8x128xf32, #tpu.memory_space<vmem>>, vector<8x128xf32>
    tpu.vector_store %arg6[%c0_29, %c0_30], %137 {strides = array<i32>} : memref<8x128xf32, #tpu.memory_space<vmem>>, vector<8x128xf32>,
    return
  }
  func.func @transform_0(%arg0: i32, %arg1: i32) -> (i32, i32) {
    %c0_i32 = arith.constant 0 : i32
    %c0_i32_0 = arith.constant 0 : i32
    return %arg0, %c0_i32 : i32, i32
  }
  func.func @transform_1(%arg0: i32, %arg1: i32) -> (i32, i32) {
    %c0_i32 = arith.constant 0 : i32
    %c0_i32_0 = arith.constant 0 : i32
    return %c0_i32, %arg1 : i32, i32
  }
  func.func @transform_2(%arg0: i32, %arg1: i32) -> (i32, i32) {
    %c0_i32 = arith.constant 0 : i32
    %c0_i32_0 = arith.constant 0 : i32
    return %arg0, %c0_i32 : i32, i32
  }
  func.func @transform_3(%arg0: i32, %arg1: i32) -> (i32, i32) {
    %c0_i32 = arith.constant 0 : i32
    %c0_i32_0 = arith.constant 0 : i32
    return %c0_i32, %arg1 : i32, i32
  }
  func.func @transform_4(%arg0: i32, %arg1: i32) -> (i32, i32) {
    %c0_i32 = arith.constant 0 : i32
    return %arg0, %arg1 : i32, i32
  }
}

</mosaic_0001>

<llo_original>
// kernel: _cost_matrix.1
$region0: #{_cost_matrix.1}
  #allocation0 [shape = 'u32[]', space=smem, size = 0x4, offset = 0x4, fixed_abs, tag = 'smem constant byte address 0x4 - core index']
  #allocation1 [shape = 'u32[144,128]{1,0:T(1,128)}', space=vmem, size = 0x12000, scoped, tag = 'internal scratch']
  %s0 = inlined_call_operand.vmem [shape: f32[16,128], index: 0, kind: input, shape index: {}]
  %s1 = inlined_call_operand.vmem [shape: bf16[128,128], index: 1, kind: input, shape index: {}]
  %s2 = inlined_call_operand.vmem [shape: f32[16,4], index: 2, kind: input, shape index: {}]
  %s3 = inlined_call_operand.vmem [shape: f32[4,128], index: 3, kind: input, shape index: {}]
  %s4 = inlined_call_operand.vmem [shape: f32[16,128], index: 4, kind: output, shape index: {}]
  %s5 = sld [smem:[#allocation0]]
  $region49: #{_cost_matrix.1} parent=0
    _
  %s7 = ssub.s32 1, %s5
  %s8 = scalar_select 0, %s7, %s5
  loop: start=0, step=1, limit=4
  $region2: #{_cost_matrix.1} parent=0 // loop_pre_header
    _
  $region3: #{_cost_matrix.1} parent=0 // loop_header
    %s10 = sphi 0, %s14
    %p11 = scmp.ge.s32.totalorder %s10, 4
    %s17 = sphi 0, %s29
    %s18 = sphi 0, %s25
    %s19 = sphi 0, %s17
    %s20 = sphi 0, %s18
    %s21 = sphi 0, %s19
    %s22 = sphi 0, %s20
    %s32 = sphi 0, %s34
    %s35 = sphi 0, %s32
    %s36 = sphi 0, %s35
    %s52 = sphi 0, %s36
    %s58 = sphi 0, %s60
    %s61 = sphi 0, %s58
    %s62 = sphi 0, %s61
    %s78 = sphi 0, %s62
    %s84 = sphi 0, %s86
    %s87 = sphi 0, %s84
    %s88 = sphi 0, %s87
    %s104 = sphi 0, %s88
    %s110 = sphi 0, %s112
    %s113 = sphi 0, %s110
    %s114 = sphi 0, %s113
    %s130 = sphi 0, %s114
    %s138 = sphi 0, %s140
    %s141 = sphi 0, %s138
    %s142 = sphi 0, %s141
    %s158 = sphi 0, %s142
  $region4: #{_cost_matrix.1} parent=0 // loop_header_branch
    %13 = sbr.rel (%p11) target = $region8
  $region5: #{_cost_matrix.1} parent=0 // loop_body
    %s15 = ssub.s32 %s10, 1
    %s16 = ssub.s32 %s10, 2
    %s23 = sadd.s32 1, %s18
    %p24 = scmp.ge.s32.totalorder %s23, 1
    %s25 = scalar_select %p24, 0, %s23
    %s26 = sadd.s32 1, %s17
    %s27 = scalar_select %p24, %s26, %s17
    %p28 = scmp.ge.s32.totalorder %s27, 2
    %s29 = scalar_select %p28, 0, %s27
    %s30 = ssub.s32 %s17, %s29
    %p31 = scmp.eq.s32.totalorder %s30, 0
    %s33 = sadd.s32 %s32, 1
    %s34 = scalar_select %p31, %s32, %s33
    %p37 = pneg %p31
    %p38 = scmp.eq.s32.totalorder %s10, 1
    %p39 = por %p37, %p38
    %p40 = scmp.ne.s32.totalorder %s32, %s35
    %p41 = scmp.eq.s32.totalorder %s10, 0
    %p42 = por %p40, %p41
    %p43 = scmp.ne.s32.totalorder %s32, %s35
    %p44 = scmp.eq.s32.totalorder %s15, 1
    %p45 = por %p43, %p44
    %p46 = scmp.ne.s32.totalorder %s35, %s36
    %p47 = scmp.eq.s32.totalorder %s15, 0
    %p48 = por %p46, %p47
    %p49 = scmp.ne.s32.totalorder %s35, %s36
    %p50 = scmp.eq.s32.totalorder %s16, 1
    %p51 = por %p49, %p50
    %p53 = scmp.ne.s32.totalorder %s36, %s52
    %p54 = scmp.eq.s32.totalorder %s16, 0
    %p55 = por %p53, %p54
    %s56 = ssub.s32 %s18, %s25
    %p57 = scmp.eq.s32.totalorder %s56, 0
    %s59 = sadd.s32 %s58, 1
    %s60 = scalar_select %p57, %s58, %s59
    %p63 = pneg %p57
    %p64 = scmp.eq.s32.totalorder %s10, 1
    %p65 = por %p63, %p64
    %p66 = scmp.ne.s32.totalorder %s58, %s61
    %p67 = scmp.eq.s32.totalorder %s10, 0
    %p68 = por %p66, %p67
    %p69 = scmp.ne.s32.totalorder %s58, %s61
    %p70 = scmp.eq.s32.totalorder %s15, 1
    %p71 = por %p69, %p70
    %p72 = scmp.ne.s32.totalorder %s61, %s62
    %p73 = scmp.eq.s32.totalorder %s15, 0
    %p74 = por %p72, %p73
    %p75 = scmp.ne.s32.totalorder %s61, %s62
    %p76 = scmp.eq.s32.totalorder %s16, 1
    %p77 = por %p75, %p76
    %p79 = scmp.ne.s32.totalorder %s62, %s78
    %p80 = scmp.eq.s32.totalorder %s16, 0
    %p81 = por %p79, %p80
    %s82 = ssub.s32 %s17, %s29
    %p83 = scmp.eq.s32.totalorder %s82, 0
    %s85 = sadd.s32 %s84, 1
    %s86 = scalar_select %p83, %s84, %s85
    %p89 = pneg %p83
    %p90 = scmp.eq.s32.totalorder %s10, 1
    %p91 = por %p89, %p90
    %p92 = scmp.ne.s32.totalorder %s84, %s87
    %p93 = scmp.eq.s32.totalorder %s10, 0
    %p94 = por %p92, %p93
    %p95 = scmp.ne.s32.totalorder %s84, %s87
    %p96 = scmp.eq.s32.totalorder %s15, 1
    %p97 = por %p95, %p96
    %p98 = scmp.ne.s32.totalorder %s87, %s88
    %p99 = scmp.eq.s32.totalorder %s15, 0
    %p100 = por %p98, %p99
    %p101 = scmp.ne.s32.totalorder %s87, %s88
    %p102 = scmp.eq.s32.totalorder %s16, 1
    %p103 = por %p101, %p102
    %p105 = scmp.ne.s32.totalorder %s88, %s104
    %p106 = scmp.eq.s32.totalorder %s16, 0
    %p107 = por %p105, %p106
    %s108 = ssub.s32 %s18, %s25
    %p109 = scmp.eq.s32.totalorder %s108, 0
    %s111 = sadd.s32 %s110, 1
    %s112 = scalar_select %p109, %s110, %s111
    %p115 = pneg %p109
    %p116 = scmp.eq.s32.totalorder %s10, 1
    %p117 = por %p115, %p116
    %p118 = scmp.ne.s32.totalorder %s110, %s113
    %p119 = scmp.eq.s32.totalorder %s10, 0
    %p120 = por %p118, %p119
    %p121 = scmp.ne.s32.totalorder %s110, %s113
    %p122 = scmp.eq.s32.totalorder %s15, 1
    %p123 = por %p121, %p122
    %p124 = scmp.ne.s32.totalorder %s113, %s114
    %p125 = scmp.eq.s32.totalorder %s15, 0
    %p126 = por %p124, %p125
    %p127 = scmp.ne.s32.totalorder %s113, %s114
    %p128 = scmp.eq.s32.totalorder %s16, 1
    %p129 = por %p127, %p128
    %p131 = scmp.ne.s32.totalorder %s114, %s130
    %p132 = scmp.eq.s32.totalorder %s16, 0
    %p133 = por %p131, %p132
    %s134 = ssub.s32 %s17, %s29
    %s135 = ssub.s32 %s18, %s25
    %s136 = sor.u32 %s134, %s135
    %p137 = scmp.eq.s32.totalorder %s136, 0
    %s139 = sadd.s32 %s138, 1
    %s140 = scalar_select %p137, %s138, %s139
    %p143 = pneg %p137
    %p144 = scmp.eq.s32.totalorder %s10, 1
    %p145 = por %p143, %p144
    %p146 = scmp.ne.s32.totalorder %s138, %s141
    %p147 = scmp.eq.s32.totalorder %s10, 0
    %p148 = por %p146, %p147
    %p149 = scmp.ne.s32.totalorder %s138, %s141
    %p150 = scmp.eq.s32.totalorder %s15, 1
    %p151 = por %p149, %p150
    %p152 = scmp.ne.s32.totalorder %s141, %s142
    %p153 = scmp.eq.s32.totalorder %s15, 0
    %p154 = por %p152, %p153
    %p155 = scmp.ne.s32.totalorder %s141, %s142
    %p156 = scmp.eq.s32.totalorder %s16, 1
    %p157 = por %p155, %p156
    %p159 = scmp.ne.s32.totalorder %s142, %s158
    %p160 = scmp.eq.s32.totalorder %s16, 0
    %p161 = por %p159, %p160
    %p162 = scmp.le.s32.totalorder 1, %s10
    %p163 = scmp.lt.s32.totalorder %s10, 3
    %p164 = pnand %p162, %p163
    %p165 = pneg %p164
    // Predicated region
    $region9: #{_cost_matrix.1} parent=5 // pred_check
      _
    $region10: #{_cost_matrix.1} parent=5 // pred_check_branch
      %167 = sbr.rel (%p164) target = $region12
    $region11: #{_cost_matrix.1} parent=5 // pred_region
      %s168 = ssub.s32 %s10, 1
      // Predicated region
      $region13: #{_cost_matrix.1} parent=11 // pred_check
        %p169 = pneg %p74
      $region14: #{_cost_matrix.1} parent=11 // pred_check_branch
        %171 = sbr.rel (%p169) target = $region16
      $region15: #{_cost_matrix.1} parent=11 // pred_region
        %p172 = scmp.lt.s32.totalorder %s20, 0
        %s173 = scalar_select %p172, %s20, 0
        %s174 = smul.addr %s173, 4
        %s175 = scalar_lea.vmem %s1, %s174
      $region16: #{_cost_matrix.1} parent=11 // pred_fallthru
        _
      // Predicated region
      $region17: #{_cost_matrix.1} parent=11 // pred_check
        %p176 = pneg %p126
      $region18: #{_cost_matrix.1} parent=11 // pred_check_branch
        %178 = sbr.rel (%p176) target = $region20
      $region19: #{_cost_matrix.1} parent=11 // pred_region
        %p179 = scmp.lt.s32.totalorder %s20, 0
        %s180 = scalar_select %p179, %s20, 0
        %s181 = smul.addr %s180, 4
        %s182 = scalar_lea.vmem %s3, %s181
      $region20: #{_cost_matrix.1} parent=11 // pred_fallthru
        _
    $region12: #{_cost_matrix.1} parent=5 // pred_fallthru
      _
    %p183 = scmp.lt.s32.totalorder %s10, 2
    // Predicated region
    $region21: #{_cost_matrix.1} parent=5 // pred_check
      %p184 = pneg %p183
    $region22: #{_cost_matrix.1} parent=5 // pred_check_branch
      %186 = sbr.rel (%p184) target = $region24
    $region23: #{_cost_matrix.1} parent=5 // pred_region
      // Predicated region
      $region25: #{_cost_matrix.1} parent=23 // pred_check
        %p187 = pneg %p42
      $region26: #{_cost_matrix.1} parent=23 // pred_check_branch
        %189 = sbr.rel (%p187) target = $region28
      $region27: #{_cost_matrix.1} parent=23 // pred_region
        %p190 = scmp.lt.s32.totalorder %s17, 1
        %s191 = scalar_select %p190, %s17, 1
        %s192 = smul.addr %s191, 8
        %s193 = scalar_lea.vmem %s0, %s192
      $region28: #{_cost_matrix.1} parent=23 // pred_fallthru
        _
      // Predicated region
      $region29: #{_cost_matrix.1} parent=23 // pred_check
        %p194 = pneg %p94
      $region30: #{_cost_matrix.1} parent=23 // pred_check_branch
        %196 = sbr.rel (%p194) target = $region32
      $region31: #{_cost_matrix.1} parent=23 // pred_region
        %p197 = scmp.lt.s32.totalorder %s17, 1
        %s198 = scalar_select %p197, %s17, 1
        %s199 = smul.addr %s198, 8
        %s200 = scalar_lea.vmem %s2, %s199
      $region32: #{_cost_matrix.1} parent=23 // pred_fallthru
        _
    $region24: #{_cost_matrix.1} parent=5 // pred_fallthru
      _
    %p201 = scmp.le.s32.totalorder 1, %s10
    %p202 = scmp.lt.s32.totalorder %s10, 3
    %p203 = pnand %p201, %p202
    %p204 = pneg %p203
    // Predicated region
    $region33: #{_cost_matrix.1} parent=5 // pred_check
      _
    $region34: #{_cost_matrix.1} parent=5 // pred_check_branch
      %206 = sbr.rel (%p203) target = $region36
    $region35: #{_cost_matrix.1} parent=5 // pred_region
      %s207 = ssub.s32 %s10, 1
      %p208 = scmp.lt.s32.totalorder %s19, 1
      %s209 = scalar_select %p208, %s19, 1
      %s210 = smul.addr %s209, 8
      %s211 = scalar_lea.vmem %s0, %s210
      %p212 = pneg %p48
      %p213 = pneg %p45
      %p214 = scmp.lt.s32.totalorder %s20, 0
      %s215 = scalar_select %p214, %s20, 0
      %s216 = smul.addr %s215, 4
      %s217 = scalar_lea.vmem %s1, %s216
      %p218 = pneg %p74
      %p219 = pneg %p71
      %p220 = scmp.lt.s32.totalorder %s19, 1
      %s221 = scalar_select %p220, %s19, 1
      %s222 = smul.addr %s221, 8
      %s223 = scalar_lea.vmem %s2, %s222
      %p224 = pneg %p100
      %p225 = pneg %p97
      %p226 = scmp.lt.s32.totalorder %s20, 0
      %s227 = scalar_select %p226, %s20, 0
      %s228 = smul.addr %s227, 4
      %s229 = scalar_lea.vmem %s3, %s228
      %p230 = pneg %p126
      %p231 = pneg %p123
      %p232 = pneg %p154
      %p233 = pneg %p151
      %p234 = scmp.lt.s32.totalorder %s19, 1
      %s235 = scalar_select %p234, %s19, 1
      %p236 = scmp.lt.s32.totalorder %s20, 0
      %s237 = scalar_select %p236, %s20, 0
      %s238 = sadd.s32 %s237, %s235
      %s239 = smul.addr %s238, 8
      %s240 = scalar_lea.vmem %s4, %s239
      %p241 = scmp.lt.s32.totalorder %s19, 1
      %s242 = scalar_select %p241, %s19, 1
      %s243 = smul.addr %s242, 8
      %s244 = scalar_lea.vmem %s0, %s243
      %p245 = scmp.lt.s32.totalorder %s20, 0
      %s246 = scalar_select %p245, %s20, 0
      %s247 = smul.addr %s246, 4
      %s248 = scalar_lea.vmem %s1, %s247
      %p249 = scmp.lt.s32.totalorder %s19, 1
      %s250 = scalar_select %p249, %s19, 1
      %s251 = smul.addr %s250, 8
      %s252 = scalar_lea.vmem %s2, %s251
      %p253 = scmp.lt.s32.totalorder %s20, 0
      %s254 = scalar_select %p253, %s20, 0
      %s255 = smul.addr %s254, 4
      %s256 = scalar_lea.vmem %s3, %s255
      %p257 = scmp.lt.s32.totalorder %s19, 1
      %s258 = scalar_select %p257, %s19, 1
      %p259 = scmp.lt.s32.totalorder %s20, 0
      %s260 = scalar_select %p259, %s20, 0
      %s261 = sadd.s32 %s260, %s258
      %s262 = smul.addr %s261, 8
      %s263 = scalar_lea.vmem %s4, %s262
      %v265 = vld [vmem:[%s244] sm:$0xff]
      %v266 = vxor.u32 %v265, 2147483648
      %v267 = vmul.f32 %v266, 1.442695
      %v268 = vpow.pop %v267
      %v269 = vadd.f32 %v268, 1.0
      %v270 = vrcp.pop %v269
      %v271 = vmul.f32 1.0, %v270
      %v272 = vadd.f32 %v271, 1e-08
      %v273 = vlog2.pop %v272
      %v274 = vmul.f32 %v273, 0.6931472
      %v275 = vsub.f32 %v274, %v265
      %v276 = vmul.f32 %v271, %v271
      %v277 = vmul.f32 %v276, 0.75
      %v278 = vsub.f32 0.0, %v275
      %v279 = vmul.f32 %v277, %v278
      %v280 = vsub.f32 1.0, %v271
      %v281 = vmul.f32 %v280, %v280
      %v282 = vmul.f32 %v281, 0.25
      %v283 = vsub.f32 0.0, %v274
      %v284 = vmul.f32 %v282, %v283
      %v285 = vsub.f32 %v284, %v279
      %v286 = vpack.c.bf16 %v285, %v285
      %v287 = vld [vmem:[%s248] sm:$0xf]
      %v288 = vld [vmem:[%s248 + $0x4] sm:$0xf]
      %v289 = vld [vmem:[%s248 + $0x8] sm:$0xf]
      %v290 = vld [vmem:[%s248 + $0xc] sm:$0xf]
      %v291 = vld [vmem:[%s248 + $0x10] sm:$0xf]
      %v292 = vld [vmem:[%s248 + $0x14] sm:$0xf]
      %v293 = vld [vmem:[%s248 + $0x18] sm:$0xf]
      %v294 = vld [vmem:[%s248 + $0x1c] sm:$0xf]
      %v295 = vld [vmem:[%s248 + $0x20] sm:$0xf]
      %v296 = vld [vmem:[%s248 + $0x24] sm:$0xf]
      %v297 = vld [vmem:[%s248 + $0x28] sm:$0xf]
      %v298 = vld [vmem:[%s248 + $0x2c] sm:$0xf]
      %v299 = vld [vmem:[%s248 + $0x30] sm:$0xf]
      %v300 = vld [vmem:[%s248 + $0x34] sm:$0xf]
      %v301 = vld [vmem:[%s248 + $0x38] sm:$0xf]
      %v302 = vld [vmem:[%s248 + $0x3c] sm:$0xf]
      %v303 = vld [vmem:[%s252] sm:$0xff]
      %v304 = vld [vmem:[%s256] sm:$0xf]
      %306 = vset.pattern.permute.xlu0 0
      %307 = vperm.xlu0 %306, %v303
      %v308 = vpop.permute.xlu0 %307
      %v310 = vlaneseq
      %v311 = vshrl.u32 %v310, 7
      %v312 = vsub.s32 0, %v311
      %v313 = vrot.slane %v304, %v312
      %v314 = vsub.f32 %v308, %v313
      %v315 = vand.u32 2147483647, %v314
      %316 = vset.pattern.permute.xlu0 1
      %317 = vperm.xlu0 %316, %v303
      %v318 = vpop.permute.xlu0 %317
      %v320 = vlaneseq
      %v321 = vshrl.u32 %v320, 7
      %v322 = vsub.s32 1, %v321
      %v323 = vrot.slane %v304, %v322
      %v324 = vsub.f32 %v318, %v323
      %v325 = vand.u32 2147483647, %v324
      %v326 = vadd.f32 %v315, %v325
      %327 = vset.pattern.permute.xlu0 2
      %328 = vperm.xlu0 %327, %v303
      %v329 = vpop.permute.xlu0 %328
      %v331 = vlaneseq
      %v332 = vshrl.u32 %v331, 7
      %v333 = vsub.s32 2, %v332
      %v334 = vrot.slane %v304, %v333
      %v335 = vsub.f32 %v329, %v334
      %v336 = vand.u32 2147483647, %v335
      %v337 = vadd.f32 %v326, %v336
      %338 = vset.pattern.permute.xlu0 3
      %339 = vperm.xlu0 %338, %v303
      %v340 = vpop.permute.xlu0 %339
      %v342 = vlaneseq
      %v343 = vshrl.u32 %v342, 7
      %v344 = vsub.s32 3, %v343
      %v345 = vrot.slane %v304, %v344
      %v346 = vsub.f32 %v340, %v345
      %v347 = vand.u32 2147483647, %v346
      %v348 = vadd.f32 %v337, %v347
      %v349 = vmul.f32 %v303, 0.5
      %351 = vrot.lane.b32.xlu0 %v349, 126
      %v352 = vpop.permute.xlu0 %351
      %v354 = vsub.f32 %v303, %v352
      %v355 = vadd.f32 %v303, %v352
      %v356 = vmul.f32 %v304, 0.5
      %v358 = vrot.slane %v356, 2
      %v360 = vsub.f32 %v304, %v358
      %v361 = vadd.f32 %v304, %v358
      %362 = vrot.lane.b32.xlu0 %v303, 127
      %v363 = vpop.permute.xlu0 %362
      %v365 = vmul.f32 %v303, %v363
      %v367 = vrot.slane %v304, 1
      %v369 = vmul.f32 %v304, %v367
      %371 = vset.pattern.permute.xlu0 0
      %372 = vperm.xlu0 %371, %v355
      %v373 = vpop.permute.xlu0 %372
      %v375 = vlaneseq
      %v376 = vshrl.u32 %v375, 7
      %v377 = vsub.s32 0, %v376
      %v378 = vrot.slane %v361, %v377
      %v379 = vmin.f32 %v373, %v378
      %381 = vset.pattern.permute.xlu0 0
      %382 = vperm.xlu0 %381, %v354
      %v383 = vpop.permute.xlu0 %382
      %v385 = vlaneseq
      %v386 = vshrl.u32 %v385, 7
      %v387 = vsub.s32 0, %v386
      %v388 = vrot.slane %v360, %v387
      %v389 = vmax.f32 %v383, %v388
      %v390 = vsub.f32 %v379, %v389
      %v391 = vmax.f32 %v390, 0.0
      %392 = vset.pattern.permute.xlu0 1
      %393 = vperm.xlu0 %392, %v355
      %v394 = vpop.permute.xlu0 %393
      %v396 = vlaneseq
      %v397 = vshrl.u32 %v396, 7
      %v398 = vsub.s32 1, %v397
      %v399 = vrot.slane %v361, %v398
      %v400 = vmin.f32 %v394, %v399
      %401 = vset.pattern.permute.xlu0 1
      %402 = vperm.xlu0 %401, %v354
      %v403 = vpop.permute.xlu0 %402
      %v405 = vlaneseq
      %v406 = vshrl.u32 %v405, 7
      %v407 = vsub.s32 1, %v406
      %v408 = vrot.slane %v360, %v407
      %v409 = vmax.f32 %v403, %v408
      %v410 = vsub.f32 %v400, %v409
      %v411 = vmax.f32 %v410, 0.0
      %v412 = vmul.f32 %v391, %v411
      %414 = vset.pattern.permute.xlu0 2
      %415 = vperm.xlu0 %414, %v365
      %v416 = vpop.permute.xlu0 %415
      %v418 = vlaneseq
      %v419 = vshrl.u32 %v418, 7
      %v420 = vsub.s32 2, %v419
      %v421 = vrot.slane %v369, %v420
      %v422 = vadd.f32 %v416, %v421
      %v423 = vsub.f32 %v422, %v412
      %v424 = vmax.f32 %v373, %v378
      %v425 = vmin.f32 %v383, %v388
      %v426 = vsub.f32 %v424, %v425
      %v427 = vmax.f32 %v426, 0.0
      %v428 = vmax.f32 %v394, %v399
      %v429 = vmin.f32 %v403, %v408
      %v430 = vsub.f32 %v428, %v429
      %v431 = vmax.f32 %v430, 0.0
      %v432 = vmul.f32 %v427, %v431
      %v433 = vrcp.pop %v423
      %v434 = vmul.f32 %v412, %v433
      %v435 = vsub.f32 1.0, %v434
      %v436 = vrcp.pop %v432
      %v437 = vmul.f32 %v423, %v436
      %v438 = vsub.f32 %v435, %v437
      %v455 = vunpack.c.l.b16 %v287
      %v456 = vunpack.c.l.b16 %v288
      %v457 = vunpack.c.l.b16 %v289
      %v458 = vunpack.c.l.b16 %v290
      %v459 = vunpack.c.l.b16 %v291
      %v460 = vunpack.c.l.b16 %v292
      %v461 = vunpack.c.l.b16 %v293
      %v462 = vunpack.c.l.b16 %v294
      %v463 = vunpack.c.l.b16 %v295
      %v464 = vunpack.c.l.b16 %v296
      %v465 = vunpack.c.l.b16 %v297
      %v466 = vunpack.c.l.b16 %v298
      %v467 = vunpack.c.l.b16 %v299
      %v468 = vunpack.c.l.b16 %v300
      %v469 = vunpack.c.l.b16 %v301
      %v470 = vunpack.c.l.b16 %v302
      %v471 = vpack.c.b16 %v456, %v455
      %v472 = vpack.c.b16 %v458, %v457
      %v473 = vpack.c.b16 %v460, %v459
      %v474 = vpack.c.b16 %v462, %v461
      %v475 = vpack.c.b16 %v464, %v463
      %v476 = vpack.c.b16 %v466, %v465
      %v477 = vpack.c.b16 %v468, %v467
      %v478 = vpack.c.b16 %v470, %v469
      %487 = vmatprep.subr.bf16.mxu0 0
      %488 = vmatpush1.bf16.msra.mxu0 %v471
      %489 = vmatprep.subr.bf16.mxu0 0
      %490 = vmatpush1.bf16.msra.mxu0 %v472
      %491 = vmatprep.subr.bf16.mxu0 0
      %492 = vmatpush1.bf16.msra.mxu0 %v473
      %493 = vmatprep.subr.bf16.mxu0 0
      %494 = vmatpush1.bf16.msra.mxu0 %v474
      %495 = vmatprep.subr.bf16.mxu0 0
      %496 = vmatpush1.bf16.msra.mxu0 %v475
      %497 = vmatprep.subr.bf16.mxu0 0
      %498 = vmatpush1.bf16.msra.mxu0 %v476
      %499 = vmatprep.subr.bf16.mxu0 0
      %500 = vmatpush1.bf16.msra.mxu0 %v477
      %501 = vmatprep.subr.bf16.mxu0 0
      %502 = vmatpush1.bf16.msra.mxu0 %v478
      %503 = vmatprep.subr.bf16.mxu0 0
      %504 = vmatpush1.bf16.msra.mxu0 0
      %505 = vmatprep.subr.bf16.mxu0 0
      %506 = vmatpush1.bf16.msra.mxu0 0
      %507 = vmatprep.subr.bf16.mxu0 0
      %508 = vmatpush1.bf16.msra.mxu0 0
      %509 = vmatprep.subr.bf16.mxu0 0
      %510 = vmatpush1.bf16.msra.mxu0 0
      %511 = vmatprep.subr.bf16.mxu0 0
      %512 = vmatpush1.bf16.msra.mxu0 0
      %513 = vmatprep.subr.bf16.mxu0 0
      %514 = vmatpush1.bf16.msra.mxu0 0
      %515 = vmatprep.subr.bf16.mxu0 0
      %516 = vmatpush1.bf16.msra.mxu0 0
      %517 = vmatprep.subr.bf16.mxu0 0
      %518 = vmatpush1.bf16.msra.mxu0 0
      %519 = vmatprep.mubr.bf16.mxu0 0
      %520 = vmatmul.mubr.bf16.gmra.mrb[0].mxu0 %v286
      %v521 = vpop.f32.mrb[0].mxu0
      %v522 = vadd.f32 %v348, %v521
      %v523 = vpop.f32.mrb[0].mxu0
      %v524 = vpop.f32.mrb[0].mxu0
      %v525 = vpop.f32.mrb[0].mxu0
      %526 = vdwg.mxu0
      %v527 = vadd.f32 %v522, %v438
      %528 = vst [vmem:[%s263] sm:$0xff] %v527
      %p529 = scmp.lt.s32.totalorder %s19, 1
      %s530 = scalar_select %p529, %s19, 1
      %p531 = scmp.lt.s32.totalorder %s20, 0
      %s532 = scalar_select %p531, %s20, 0
      %s533 = sadd.s32 %s532, %s530
      %s534 = smul.addr %s533, 8
      %s535 = scalar_lea.vmem %s4, %s534
      // Predicated region
      $region37: #{_cost_matrix.1} parent=35 // pred_check
        %p536 = pneg %p151
      $region38: #{_cost_matrix.1} parent=35 // pred_check_branch
        %538 = sbr.rel (%p536) target = $region40
      $region39: #{_cost_matrix.1} parent=35 // pred_region
        _
      $region40: #{_cost_matrix.1} parent=35 // pred_fallthru
        _
    $region36: #{_cost_matrix.1} parent=5 // pred_fallthru
      _
    %p539 = scmp.le.s32.totalorder 2, %s10
    // Predicated region
    $region41: #{_cost_matrix.1} parent=5 // pred_check
      %p540 = pneg %p539
    $region42: #{_cost_matrix.1} parent=5 // pred_check_branch
      %542 = sbr.rel (%p540) target = $region44
    $region43: #{_cost_matrix.1} parent=5 // pred_region
      %s543 = ssub.s32 %s10, 2
      // Predicated region
      $region45: #{_cost_matrix.1} parent=43 // pred_check
        %p544 = pneg %p157
      $region46: #{_cost_matrix.1} parent=43 // pred_check_branch
        %546 = sbr.rel (%p544) target = $region48
      $region47: #{_cost_matrix.1} parent=43 // pred_region
        %p547 = scmp.lt.s32.totalorder %s21, 1
        %s548 = scalar_select %p547, %s21, 1
        %p549 = scmp.lt.s32.totalorder %s22, 0
        %s550 = scalar_select %p549, %s22, 0
        %s551 = sadd.s32 %s550, %s548
        %s552 = smul.addr %s551, 8
        %s553 = scalar_lea.vmem %s4, %s552
      $region48: #{_cost_matrix.1} parent=43 // pred_fallthru
        _
    $region44: #{_cost_matrix.1} parent=5 // pred_fallthru
      _
  $region6: #{_cost_matrix.1} parent=0 // loop_footer
    %s14 = sadd.s32 1, %s10
  $region7: #{_cost_matrix.1} parent=0 // loop_footer_branch
    %9 = sbr.rel target = $region3
  $region8: #{_cost_matrix.1} parent=0 // loop_exit
    _

</llo_original>
